<compile_context>
chip_gen: v5e
topology: v5e:2x2
jax: 0.10.0
libtpu: 0.0.40
codegen_flags: <defaults>
</compile_context>

<pallas_src>
from functools import partial

import jax
import jax.numpy as jnp
from jax import lax
from jax.experimental import pallas as pl
from jax.experimental.pallas import tpu as pltpu


def odgcn_kernel(g_ref, src_ref, dst_ref, w_ref, b_ref, o_ref, slab_ref, *,
                 max_diffusion_step, feat_dim, num_nodes, batch_tile):
    K = max_diffusion_step
    F = feat_dim
    N = num_nodes
    parts_per_dir = K + 1

    # (N, N) bf16 identity, hoisted out of the batch loop.  Used to form g^T
    # on the MXU via NT dimension numbers (no XLU transpose, no second graph
    # stream from HBM).
    rows = lax.broadcasted_iota(jnp.int32, (N, N), 0)
    cols = lax.broadcasted_iota(jnp.int32, (N, N), 1)
    eye_bf = jnp.where(rows == cols, 1.0, 0.0).astype(jnp.bfloat16)

    nt_dims = (((1,), (1,)), ((), ()))   # contract both minor dims: a @ b^T

    def body(bi, carry):
        row = pl.multiple_of(bi * N, N)
        g = g_ref[bi]                    # (N, N) bf16, forward graph

        # gt[i, j] = sum_k eye[i, k] * g[j, k] = g[j, i]  ->  g^T (exact).
        gt = lax.dot_general(
            eye_bf, g, nt_dims,
            preferred_element_type=jnp.float32).astype(jnp.bfloat16)

        def diffuse(gmat, x0_bf, col0):
            # Chebyshev-style diffusion; writes [x0, x1, ..., xK] (bf16) into
            # the slab at static column offsets col0, col0+F, ...
            slab_ref[pl.ds(row, N), col0:col0 + F] = x0_bf
            x0_f = x0_bf.astype(jnp.float32)
            x1_f = jnp.dot(gmat, x0_bf, preferred_element_type=jnp.float32)
            x1_bf = x1_f.astype(jnp.bfloat16)
            slab_ref[pl.ds(row, N), col0 + F:col0 + 2 * F] = x1_bf
            for k in range(2, K + 1):
                x2_f = 2.0 * jnp.dot(gmat, x1_bf,
                                     preferred_element_type=jnp.float32) - x0_f
                x2_bf = x2_f.astype(jnp.bfloat16)
                c = col0 + k * F
                slab_ref[pl.ds(row, N), c:c + F] = x2_bf
                x0_f, x1_f, x1_bf = x1_f, x2_f, x2_bf

        diffuse(g, src_ref[bi], 0)                     # forward graph, src feats
        diffuse(gt, dst_ref[bi], parts_per_dir * F)    # transposed graph, dst
        return carry

    lax.fori_loop(0, batch_tile, body, 0, unroll=batch_tile <= 4)

    # Single deep projection for the whole batch tile: (bt*N, 2*(K+1)*F) @ W.
    out = jnp.dot(slab_ref[...], w_ref[...],
                  preferred_element_type=jnp.float32) + b_ref[...]
    o_ref[...] = out.astype(o_ref.dtype)


def _vmem_capacity_bytes():
    try:
        return int(pltpu.get_tpu_info().vmem_capacity_bytes)
    except Exception:
        return 64 << 20          # conservative: v7x per-TensorCore VMEM


def _pick_batch_tile(B, N, F, K, out_hidden, w_bytes, b_bytes, vmem_cap):
    # Per-batch-element resident bytes: double-buffered bf16 graph + features,
    # double-buffered f32 output, single-buffered bf16 scratch slab.
    per_bt = (2 * N * N * 2
              + 2 * 2 * N * F * 2
              + 2 * N * out_hidden * 4
              + N * 2 * (K + 1) * F * 2)
    fixed = 2 * (w_bytes + b_bytes)          # grid-invariant weight/bias
    budget = max(vmem_cap - (8 << 20) - fixed, per_bt)
    max_bt = max(1, budget // per_bt)

    # v7x-class chips (64 MiB VMEM) have 2 TensorCores sharing the parallel
    # grid axis: keep >= 2 pipelined grid steps per core when B allows it.
    # Single-TC chips (v5e/v6e): prefer the largest batch tile (amortizes the
    # ~0.35 us per-step overhead).
    multi_tc = vmem_cap <= (64 << 20)
    if multi_tc:
        min_steps = 4 if B >= 4 else min(B, 2)
    else:
        min_steps = 1

    best = 1
    for bt in range(1, B + 1):
        if B % bt:
            continue
        if bt > max_bt:
            break
        if B // bt < min_steps:
            continue
        best = bt
    return best


def odgcn_forward(od_graph, state, flow_src, flow_dst, node_emb, w, b,
                  max_diffusion_step):
    # Feature concatenation (matches torch.cat(..., dim=-1)); done in XLA.
    src_feats = jnp.concatenate([flow_src, node_emb, state], axis=-1)
    dst_feats = jnp.concatenate([flow_dst, node_emb, state], axis=-1)

    B, N, F = src_feats.shape
    lin_in, out_hidden = w.shape
    K = max_diffusion_step
    assert lin_in == 2 * F * (K + 1)
    assert K >= 1, "max_diffusion_step must be >= 1 (as in the torch module)"

    # bf16 MXU operands, f32 accumulation.  Only ONE graph copy is streamed
    # from HBM; the transposed graph is formed in-kernel.
    g_bf = od_graph.astype(jnp.bfloat16)
    src_bf = src_feats.astype(jnp.bfloat16)
    dst_bf = dst_feats.astype(jnp.bfloat16)
    w_bf = w.astype(jnp.bfloat16)
    b_f32 = b.astype(jnp.float32)

    vmem_cap = _vmem_capacity_bytes()
    bt = _pick_batch_tile(B, N, F, K, out_hidden,
                          w_bf.size * 2, b_f32.size * 4, vmem_cap)
    grid = (B // bt,)

    slab_cols = 2 * (K + 1) * F
    per_step = (2 * bt * N * N * 2 + 2 * 2 * bt * N * F * 2
                + 2 * bt * N * out_hidden * 4 + bt * N * slab_cols * 2
                + 2 * (w_bf.size * 2 + b_f32.size * 4))
    # Never request more than physical VMEM (v7x has only 64 MiB per core).
    vmem_limit = int(min(max(2 * per_step, 16 << 20), vmem_cap - (2 << 20)))

    kernel = partial(odgcn_kernel, max_diffusion_step=K, feat_dim=F,
                     num_nodes=N, batch_tile=bt)

    out2d = pl.pallas_call(
        kernel,
        out_shape=jax.ShapeDtypeStruct((B * N, out_hidden), jnp.float32),
        grid=grid,
        in_specs=[
            pl.BlockSpec((bt, N, N), lambda i: (i, 0, 0)),
            pl.BlockSpec((bt, N, F), lambda i: (i, 0, 0)),
            pl.BlockSpec((bt, N, F), lambda i: (i, 0, 0)),
            pl.BlockSpec((lin_in, out_hidden), lambda i: (0, 0)),
            pl.BlockSpec((1, out_hidden), lambda i: (0, 0)),
        ],
        out_specs=pl.BlockSpec((bt * N, out_hidden), lambda i: (i, 0)),
        scratch_shapes=[pltpu.VMEM((bt * N, slab_cols), jnp.bfloat16)],
        compiler_params=pltpu.CompilerParams(
            dimension_semantics=("parallel",),
            vmem_limit_bytes=vmem_limit),
    )(g_bf, src_bf, dst_bf, w_bf, b_f32)

    return out2d.reshape(B, N, out_hidden)


def odgcn_reference(od_graph, state, flow_src, flow_dst, node_emb, w, b,
                    max_diffusion_step):
    """Pure-JAX f32 reference matching the PyTorch semantics."""
    def diffusion(g, x):
        x0 = x
        xs = [x0]
        x1 = jnp.einsum("bij,bjf->bif", g, x0)
        xs.append(x1)
        for _ in range(2, max_diffusion_step + 1):
            x2 = 2.0 * jnp.einsum("bij,bjf->bif", g, x1) - x0
            xs.append(x2)
            x1, x0 = x2, x1
        return jnp.concatenate(xs, axis=-1)

    src_feats = jnp.concatenate([flow_src, node_emb, state], axis=-1)
    dst_feats = jnp.concatenate([flow_dst, node_emb, state], axis=-1)
    fwd = od_graph
    bwd = jnp.transpose(od_graph, (0, 2, 1))
    out = jnp.concatenate([diffusion(fwd, src_feats),
                           diffusion(bwd, dst_feats)], axis=-1)
    return out @ w + b[0]


if __name__ == "__main__":
    B, N = 2, 16
    d_flow, d_emb, d_state = 8, 8, 16
    in_hidden = d_flow + d_emb + d_state          # 32
    out_hidden = 32
    max_diffusion_step = 2
    lin_in = 2 * in_hidden * (max_diffusion_step + 1)   # 192

    key = jax.random.PRNGKey(0)
    ks = jax.random.split(key, 7)
    od_graph = jax.random.uniform(ks[0], (B, N, N), jnp.float32)
    state = jax.random.normal(ks[1], (B, N, d_state), jnp.float32)
    flow_src = jax.random.normal(ks[2], (B, N, d_flow), jnp.float32)
    flow_dst = jax.random.normal(ks[3], (B, N, d_flow), jnp.float32)
    node_emb = jax.random.normal(ks[4], (B, N, d_emb), jnp.float32)

    # deterministic linear params (kaiming-uniform-ish, like nn.Linear defaults)
    bound = 1.0 / (lin_in ** 0.5)
    w = jax.random.uniform(ks[5], (lin_in, out_hidden), jnp.float32,
                           minval=-bound, maxval=bound)
    b = jax.random.uniform(ks[6], (1, out_hidden), jnp.float32,
                           minval=-bound, maxval=bound)

    out = odgcn_forward(od_graph, state, flow_src, flow_dst, node_emb,
                        w, b, max_diffusion_step)
    out = jax.block_until_ready(out)

    ref = odgcn_reference(od_graph, state, flow_src, flow_dst, node_emb,
                          w, b, max_diffusion_step)
    assert out.shape == (B, N, out_hidden)
    # bf16 MXU inputs with f32 accumulation: allow a small relative tolerance.
    err = float(jnp.max(jnp.abs(out - ref)))
    tol = 3e-2 * float(jnp.max(jnp.abs(ref))) + 1e-3
    assert err <= tol, (err, tol)
    print("KERNEL_OK")
</pallas_src>

<mosaic_0001>
module attributes {stable_mosaic.version = 11 : i64} {
  func.func @odgcn_kernel(%arg0: i32, %arg1: memref<1x16x16xbf16, #tpu.memory_space<vmem>>, %arg2: memref<1x16x32xbf16, #tpu.memory_space<vmem>>, %arg3: memref<1x16x32xbf16, #tpu.memory_space<vmem>>, %arg4: memref<192x32xbf16, #tpu.memory_space<vmem>>, %arg5: memref<1x32xf32, #tpu.memory_space<vmem>>, %arg6: memref<16x32xf32, #tpu.memory_space<vmem>>, %arg7: memref<16x192xbf16, #tpu.memory_space<vmem>>) attributes {dimension_semantics = [#tpu.dimension_semantics<parallel>], iteration_bounds = array<i64: 2>, scalar_prefetch = 0 : i64, scratch_operands = 1 : i64, tpu.core_type = #tpu.core_type<tc>, window_params = [{transform_indices = @transform_0, window_bounds = array<i64: 1, 16, 16>}, {transform_indices = @transform_1, window_bounds = array<i64: 1, 16, 32>}, {transform_indices = @transform_2, window_bounds = array<i64: 1, 16, 32>}, {pipeline_mode = #tpu.pipeline_mode<synchronous>, transform_indices = @transform_3, window_bounds = array<i64: 192, 32>}, {pipeline_mode = #tpu.pipeline_mode<synchronous>, transform_indices = @transform_4, window_bounds = array<i64: 1, 32>}, {transform_indices = @transform_5, window_bounds = array<i64: 16, 32>}]} {
    %0 = tpu.iota {dimensions = array<i32: 0>} : vector<16x16xi32>
    %1 = tpu.iota {dimensions = array<i32: 1>} : vector<16x16xi32>
    %2 = arith.cmpi eq, %0, %1 : vector<16x16xi32>
    %cst = arith.constant 1.000000e+00 : f32
    %cst_0 = arith.constant 0.000000e+00 : f32
    %3 = vector.broadcast %cst : f32 to vector<16x16xf32>
    %4 = vector.broadcast %cst_0 : f32 to vector<16x16xf32>
    %5 = arith.select %2, %3, %4 : vector<16x16xi1>, vector<16x16xf32>
    %6 = arith.truncf %5 : vector<16x16xf32> to vector<16x16xbf16>
    %c0_i32 = arith.constant 0 : i32
    %c16_i32 = arith.constant 16 : i32
    %7 = arith.muli %c0_i32, %c16_i32 : i32
    %8 = tpu.assume_multiple %7, 16 : i32
    %9 = arith.index_cast %c0_i32 : i32 to index
    %c0 = arith.constant 0 : index
    %c0_1 = arith.constant 0 : index
    %10 = vector.load %arg1[%9, %c0, %c0_1] : memref<1x16x16xbf16, #tpu.memory_space<vmem>>, vector<1x16x16xbf16>
    %11 = vector.shape_cast %10 : vector<1x16x16xbf16> to vector<16x16xbf16>
    %cst_2 = arith.constant dense<0.000000e+00> : vector<16x16xf32>
    %12 = tpu.matmul %6, %11, %cst_2 {dimension_numbers = #tpu.dot_dimension_numbers<[1], [1], [0], [0], [0, 0, 1, 0], [], []>} : vector<16x16xbf16>, vector<16x16xbf16>, vector<16x16xf32> -> vector<16x16xf32>
    %13 = arith.truncf %12 : vector<16x16xf32> to vector<16x16xbf16>
    %14 = arith.index_cast %c0_i32 : i32 to index
    %c0_3 = arith.constant 0 : index
    %c0_4 = arith.constant 0 : index
    %15 = vector.load %arg2[%14, %c0_3, %c0_4] : memref<1x16x32xbf16, #tpu.memory_space<vmem>>, vector<1x16x32xbf16>
    %16 = vector.shape_cast %15 : vector<1x16x32xbf16> to vector<16x32xbf16>
    %17 = arith.index_cast %8 : i32 to index
    %c0_5 = arith.constant 0 : index
    %18 = vector.load %arg7[%17, %c0_5] : memref<16x192xbf16, #tpu.memory_space<vmem>>, vector<16x32xbf16>
    tpu.vector_store %arg7[%17, %c0_5], %16 {strides = array<i32>} : memref<16x192xbf16, #tpu.memory_space<vmem>>, vector<16x32xbf16>,
    %19 = arith.extf %16 : vector<16x32xbf16> to vector<16x32xf32>
    %cst_6 = arith.constant dense<0.000000e+00> : vector<16x32xf32>
    %20 = tpu.matmul %11, %16, %cst_6 {dimension_numbers = #tpu.dot_dimension_numbers<[1], [0], [0], [1], [0, 0, 1, 1], [], []>} : vector<16x16xbf16>, vector<16x32xbf16>, vector<16x32xf32> -> vector<16x32xf32>
    %21 = arith.truncf %20 : vector<16x32xf32> to vector<16x32xbf16>
    %22 = arith.index_cast %8 : i32 to index
    %c32 = arith.constant 32 : index
    %23 = vector.load %arg7[%22, %c32] : memref<16x192xbf16, #tpu.memory_space<vmem>>, vector<16x32xbf16>
    tpu.vector_store %arg7[%22, %c32], %21 {strides = array<i32>} : memref<16x192xbf16, #tpu.memory_space<vmem>>, vector<16x32xbf16>,
    %cst_7 = arith.constant dense<0.000000e+00> : vector<16x32xf32>
    %24 = tpu.matmul %11, %21, %cst_7 {dimension_numbers = #tpu.dot_dimension_numbers<[1], [0], [0], [1], [0, 0, 1, 1], [], []>} : vector<16x16xbf16>, vector<16x32xbf16>, vector<16x32xf32> -> vector<16x32xf32>
    %cst_8 = arith.constant 2.000000e+00 : f32
    %25 = vector.broadcast %cst_8 : f32 to vector<16x32xf32>
    %26 = arith.mulf %25, %24 : vector<16x32xf32>
    %27 = arith.subf %26, %19 : vector<16x32xf32>
    %28 = arith.truncf %27 : vector<16x32xf32> to vector<16x32xbf16>
    %29 = arith.index_cast %8 : i32 to index
    %c64 = arith.constant 64 : index
    %30 = vector.load %arg7[%29, %c64] : memref<16x192xbf16, #tpu.memory_space<vmem>>, vector<16x32xbf16>
    tpu.vector_store %arg7[%29, %c64], %28 {strides = array<i32>} : memref<16x192xbf16, #tpu.memory_space<vmem>>, vector<16x32xbf16>,
    %31 = arith.index_cast %c0_i32 : i32 to index
    %c0_9 = arith.constant 0 : index
    %c0_10 = arith.constant 0 : index
    %32 = vector.load %arg3[%31, %c0_9, %c0_10] : memref<1x16x32xbf16, #tpu.memory_space<vmem>>, vector<1x16x32xbf16>
    %33 = vector.shape_cast %32 : vector<1x16x32xbf16> to vector<16x32xbf16>
    %34 = arith.index_cast %8 : i32 to index
    %c96 = arith.constant 96 : index
    %35 = vector.load %arg7[%34, %c96] : memref<16x192xbf16, #tpu.memory_space<vmem>>, vector<16x32xbf16>
    tpu.vector_store %arg7[%34, %c96], %33 {strides = array<i32>} : memref<16x192xbf16, #tpu.memory_space<vmem>>, vector<16x32xbf16>,
    %36 = arith.extf %33 : vector<16x32xbf16> to vector<16x32xf32>
    %cst_11 = arith.constant dense<0.000000e+00> : vector<16x32xf32>
    %37 = tpu.matmul %13, %33, %cst_11 {dimension_numbers = #tpu.dot_dimension_numbers<[1], [0], [0], [1], [0, 0, 1, 1], [], []>} : vector<16x16xbf16>, vector<16x32xbf16>, vector<16x32xf32> -> vector<16x32xf32>
    %38 = arith.truncf %37 : vector<16x32xf32> to vector<16x32xbf16>
    %39 = arith.index_cast %8 : i32 to index
    %c128 = arith.constant 128 : index
    %40 = vector.load %arg7[%39, %c128] : memref<16x192xbf16, #tpu.memory_space<vmem>>, vector<16x32xbf16>
    tpu.vector_store %arg7[%39, %c128], %38 {strides = array<i32>} : memref<16x192xbf16, #tpu.memory_space<vmem>>, vector<16x32xbf16>,
    %cst_12 = arith.constant dense<0.000000e+00> : vector<16x32xf32>
    %41 = tpu.matmul %13, %38, %cst_12 {dimension_numbers = #tpu.dot_dimension_numbers<[1], [0], [0], [1], [0, 0, 1, 1], [], []>} : vector<16x16xbf16>, vector<16x32xbf16>, vector<16x32xf32> -> vector<16x32xf32>
    %cst_13 = arith.constant 2.000000e+00 : f32
    %42 = vector.broadcast %cst_13 : f32 to vector<16x32xf32>
    %43 = arith.mulf %42, %41 : vector<16x32xf32>
    %44 = arith.subf %43, %36 : vector<16x32xf32>
    %45 = arith.truncf %44 : vector<16x32xf32> to vector<16x32xbf16>
    %46 = arith.index_cast %8 : i32 to index
    %c160 = arith.constant 160 : index
    %47 = vector.load %arg7[%46, %c160] : memref<16x192xbf16, #tpu.memory_space<vmem>>, vector<16x32xbf16>
    tpu.vector_store %arg7[%46, %c160], %45 {strides = array<i32>} : memref<16x192xbf16, #tpu.memory_space<vmem>>, vector<16x32xbf16>,
    %c1_i32 = arith.constant 1 : i32
    %c0_14 = arith.constant 0 : index
    %c0_15 = arith.constant 0 : index
    %48 = vector.load %arg7[%c0_14, %c0_15] : memref<16x192xbf16, #tpu.memory_space<vmem>>, vector<16x192xbf16>
    %c0_16 = arith.constant 0 : index
    %c0_17 = arith.constant 0 : index
    %49 = vector.load %arg4[%c0_16, %c0_17] : memref<192x32xbf16, #tpu.memory_space<vmem>>, vector<192x32xbf16>
    %cst_18 = arith.constant dense<0.000000e+00> : vector<16x32xf32>
    %50 = tpu.matmul %48, %49, %cst_18 {dimension_numbers = #tpu.dot_dimension_numbers<[1], [0], [0], [1], [0, 0, 1, 1], [], []>} : vector<16x192xbf16>, vector<192x32xbf16>, vector<16x32xf32> -> vector<16x32xf32>
    %c0_19 = arith.constant 0 : index
    %c0_20 = arith.constant 0 : index
    %51 = vector.load %arg5[%c0_19, %c0_20] : memref<1x32xf32, #tpu.memory_space<vmem>>, vector<1x32xf32>
    %52 = vector.broadcast %51 : vector<1x32xf32> to vector<16x32xf32>
    %53 = arith.addf %50, %52 : vector<16x32xf32>
    %c0_21 = arith.constant 0 : index
    %c0_22 = arith.constant 0 : index
    %54 = vector.load %arg6[%c0_21, %c0_22] : memref<16x32xf32, #tpu.memory_space<vmem>>, vector<16x32xf32>
    tpu.vector_store %arg6[%c0_21, %c0_22], %53 {strides = array<i32>} : memref<16x32xf32, #tpu.memory_space<vmem>>, vector<16x32xf32>,
    return
  }
  func.func @transform_0(%arg0: i32) -> (i32, i32, i32) {
    %c0_i32 = arith.constant 0 : i32
    %c0_i32_0 = arith.constant 0 : i32
    %c0_i32_1 = arith.constant 0 : i32
    return %arg0, %c0_i32, %c0_i32_0 : i32, i32, i32
  }
  func.func @transform_1(%arg0: i32) -> (i32, i32, i32) {
    %c0_i32 = arith.constant 0 : i32
    %c0_i32_0 = arith.constant 0 : i32
    %c0_i32_1 = arith.constant 0 : i32
    return %arg0, %c0_i32, %c0_i32_0 : i32, i32, i32
  }
  func.func @transform_2(%arg0: i32) -> (i32, i32, i32) {
    %c0_i32 = arith.constant 0 : i32
    %c0_i32_0 = arith.constant 0 : i32
    %c0_i32_1 = arith.constant 0 : i32
    return %arg0, %c0_i32, %c0_i32_0 : i32, i32, i32
  }
  func.func @transform_3(%arg0: i32) -> (i32, i32) {
    %c0_i32 = arith.constant 0 : i32
    %c0_i32_0 = arith.constant 0 : i32
    %c0_i32_1 = arith.constant 0 : i32
    return %c0_i32, %c0_i32_0 : i32, i32
  }
  func.func @transform_4(%arg0: i32) -> (i32, i32) {
    %c0_i32 = arith.constant 0 : i32
    %c0_i32_0 = arith.constant 0 : i32
    %c0_i32_1 = arith.constant 0 : i32
    return %c0_i32, %c0_i32_0 : i32, i32
  }
  func.func @transform_5(%arg0: i32) -> (i32, i32) {
    %c0_i32 = arith.constant 0 : i32
    %c0_i32_0 = arith.constant 0 : i32
    return %arg0, %c0_i32 : i32, i32
  }
}

</mosaic_0001>

<llo_original>
// kernel: tpu_custom_call.1
$region0: #{tpu_custom_call.1}
  #allocation0 [shape = 'u32[]', space=smem, size = 0x4, offset = 0x4, fixed_abs, tag = 'smem constant byte address 0x4 - core index']
  #allocation1 [shape = 'u32[72,128]{1,0:T(1,128)}', space=vmem, size = 0x9000, scoped, tag = 'internal scratch']
  #allocation2 [shape = 'bf16[16,192]{1,0:T(8,128)(2,1)}', space=vmem, size = 0x2000, scoped, tag = 'scratch operand']
  %s0 = inlined_call_operand.vmem [shape: bf16[2,16,16], index: 0, kind: input, shape index: {}]
  %s1 = inlined_call_operand.vmem [shape: bf16[2,16,32], index: 1, kind: input, shape index: {}]
  %s2 = inlined_call_operand.vmem [shape: bf16[2,16,32], index: 2, kind: input, shape index: {}]
  %s3 = inlined_call_operand.vmem [shape: bf16[192,32], index: 3, kind: input, shape index: {}]
  %s4 = inlined_call_operand.vmem [shape: f32[1,32], index: 4, kind: input, shape index: {}]
  %s5 = inlined_call_operand.hbm [shape: f32[32,32], index: 5, kind: output, shape index: {}]
  %s6 = sld [smem:[#allocation0]]
  $region53: #{tpu_custom_call.1} parent=0
    _
  %s8 = ssub.s32 1, %s6
  %s9 = scalar_select 0, %s8, %s6
  $region1: #{tpu_custom_call.1} parent=0
    #allocation3 [shape = 'u8[16384]{0}', space=vmem, size = 0x4000, scoped, tag = 'output window, operand 0']
    #allocation4 [shape = 's32[2]{0}', space=sflag, size = 0x8, scoped, tag = 'scoped memory for tpu_custom_call.1']
    %10 = vsyncpa [#allocation4], 0
    %s11 = scalar_lea.sflag [#allocation4], 1
    %12 = vsyncpa %s11, 0
    loop: start=0, step=1, limit=4
    $region2: #{tpu_custom_call.1} parent=1 // loop_pre_header
      _
    $region3: #{tpu_custom_call.1} parent=1 // loop_header
      %s14 = sphi 0, %s18
      %p15 = scmp.ge.s32.totalorder %s14, 4
      %s24 = sphi 0, %s26
      %s27 = sphi 0, %s24
      %s28 = sphi 0, %s27
      %s44 = sphi 0, %s28
      %s50 = sphi 0, %s52
      %s53 = sphi 0, %s50
      %s54 = sphi 0, %s53
      %s70 = sphi 0, %s54
      %s76 = sphi 0, %s78
      %s79 = sphi 0, %s76
      %s80 = sphi 0, %s79
      %s96 = sphi 0, %s80
      %s100 = sphi 0, %s100
      %s102 = sphi 0, %s100
      %s103 = sphi 0, %s102
      %s117 = sphi 0, %s103
      %s121 = sphi 0, %s121
      %s123 = sphi 0, %s121
      %s124 = sphi 0, %s123
      %s138 = sphi 0, %s124
      %s144 = sphi 0, %s146
      %s147 = sphi 0, %s144
      %s148 = sphi 0, %s147
      %s164 = sphi 0, %s148
    $region4: #{tpu_custom_call.1} parent=1 // loop_header_branch
      %17 = sbr.rel (%p15) target = $region8
    $region5: #{tpu_custom_call.1} parent=1 // loop_body
      %s19 = ssub.s32 %s14, 1
      %s20 = ssub.s32 %s14, 2
      %s21 = sadd.s32 %s14, 1
      %s22 = ssub.s32 %s14, %s21
      %p23 = scmp.eq.s32.totalorder %s22, 0
      %s25 = sadd.s32 %s24, 1
      %s26 = scalar_select %p23, %s24, %s25
      %p29 = pneg %p23
      %p30 = scmp.eq.s32.totalorder %s14, 1
      %p31 = por %p29, %p30
      %p32 = scmp.ne.s32.totalorder %s24, %s27
      %p33 = scmp.eq.s32.totalorder %s14, 0
      %p34 = por %p32, %p33
      %p35 = scmp.ne.s32.totalorder %s24, %s27
      %p36 = scmp.eq.s32.totalorder %s19, 1
      %p37 = por %p35, %p36
      %p38 = scmp.ne.s32.totalorder %s27, %s28
      %p39 = scmp.eq.s32.totalorder %s19, 0
      %p40 = por %p38, %p39
      %p41 = scmp.ne.s32.totalorder %s27, %s28
      %p42 = scmp.eq.s32.totalorder %s20, 1
      %p43 = por %p41, %p42
      %p45 = scmp.ne.s32.totalorder %s28, %s44
      %p46 = scmp.eq.s32.totalorder %s20, 0
      %p47 = por %p45, %p46
      %s48 = ssub.s32 %s14, %s21
      %p49 = scmp.eq.s32.totalorder %s48, 0
      %s51 = sadd.s32 %s50, 1
      %s52 = scalar_select %p49, %s50, %s51
      %p55 = pneg %p49
      %p56 = scmp.eq.s32.totalorder %s14, 1
      %p57 = por %p55, %p56
      %p58 = scmp.ne.s32.totalorder %s50, %s53
      %p59 = scmp.eq.s32.totalorder %s14, 0
      %p60 = por %p58, %p59
      %p61 = scmp.ne.s32.totalorder %s50, %s53
      %p62 = scmp.eq.s32.totalorder %s19, 1
      %p63 = por %p61, %p62
      %p64 = scmp.ne.s32.totalorder %s53, %s54
      %p65 = scmp.eq.s32.totalorder %s19, 0
      %p66 = por %p64, %p65
      %p67 = scmp.ne.s32.totalorder %s53, %s54
      %p68 = scmp.eq.s32.totalorder %s20, 1
      %p69 = por %p67, %p68
      %p71 = scmp.ne.s32.totalorder %s54, %s70
      %p72 = scmp.eq.s32.totalorder %s20, 0
      %p73 = por %p71, %p72
      %s74 = ssub.s32 %s14, %s21
      %p75 = scmp.eq.s32.totalorder %s74, 0
      %s77 = sadd.s32 %s76, 1
      %s78 = scalar_select %p75, %s76, %s77
      %p81 = pneg %p75
      %p82 = scmp.eq.s32.totalorder %s14, 1
      %p83 = por %p81, %p82
      %p84 = scmp.ne.s32.totalorder %s76, %s79
      %p85 = scmp.eq.s32.totalorder %s14, 0
      %p86 = por %p84, %p85
      %p87 = scmp.ne.s32.totalorder %s76, %s79
      %p88 = scmp.eq.s32.totalorder %s19, 1
      %p89 = por %p87, %p88
      %p90 = scmp.ne.s32.totalorder %s79, %s80
      %p91 = scmp.eq.s32.totalorder %s19, 0
      %p92 = por %p90, %p91
      %p93 = scmp.ne.s32.totalorder %s79, %s80
      %p94 = scmp.eq.s32.totalorder %s20, 1
      %p95 = por %p93, %p94
      %p97 = scmp.ne.s32.totalorder %s80, %s96
      %p98 = scmp.eq.s32.totalorder %s20, 0
      %p99 = por %p97, %p98
      %s101 = sadd.s32 %s100, 1
      %p104 = scmp.eq.s32.totalorder %s14, 1
      %p105 = scmp.ne.s32.totalorder %s100, %s102
      %p106 = scmp.eq.s32.totalorder %s14, 0
      %p107 = por %p105, %p106
      %p108 = scmp.ne.s32.totalorder %s100, %s102
      %p109 = scmp.eq.s32.totalorder %s19, 1
      %p110 = por %p108, %p109
      %p111 = scmp.ne.s32.totalorder %s102, %s103
      %p112 = scmp.eq.s32.totalorder %s19, 0
      %p113 = por %p111, %p112
      %p114 = scmp.ne.s32.totalorder %s102, %s103
      %p115 = scmp.eq.s32.totalorder %s20, 1
      %p116 = por %p114, %p115
      %p118 = scmp.ne.s32.totalorder %s103, %s117
      %p119 = scmp.eq.s32.totalorder %s20, 0
      %p120 = por %p118, %p119
      %s122 = sadd.s32 %s121, 1
      %p125 = scmp.eq.s32.totalorder %s14, 1
      %p126 = scmp.ne.s32.totalorder %s121, %s123
      %p127 = scmp.eq.s32.totalorder %s14, 0
      %p128 = por %p126, %p127
      %p129 = scmp.ne.s32.totalorder %s121, %s123
      %p130 = scmp.eq.s32.totalorder %s19, 1
      %p131 = por %p129, %p130
      %p132 = scmp.ne.s32.totalorder %s123, %s124
      %p133 = scmp.eq.s32.totalorder %s19, 0
      %p134 = por %p132, %p133
      %p135 = scmp.ne.s32.totalorder %s123, %s124
      %p136 = scmp.eq.s32.totalorder %s20, 1
      %p137 = por %p135, %p136
      %p139 = scmp.ne.s32.totalorder %s124, %s138
      %p140 = scmp.eq.s32.totalorder %s20, 0
      %p141 = por %p139, %p140
      %s142 = ssub.s32 %s14, %s21
      %p143 = scmp.eq.s32.totalorder %s142, 0
      %s145 = sadd.s32 %s144, 1
      %s146 = scalar_select %p143, %s144, %s145
      %p149 = pneg %p143
      %p150 = scmp.eq.s32.totalorder %s14, 1
      %p151 = por %p149, %p150
      %p152 = scmp.ne.s32.totalorder %s144, %s147
      %p153 = scmp.eq.s32.totalorder %s14, 0
      %p154 = por %p152, %p153
      %p155 = scmp.ne.s32.totalorder %s144, %s147
      %p156 = scmp.eq.s32.totalorder %s19, 1
      %p157 = por %p155, %p156
      %p158 = scmp.ne.s32.totalorder %s147, %s148
      %p159 = scmp.eq.s32.totalorder %s19, 0
      %p160 = por %p158, %p159
      %p161 = scmp.ne.s32.totalorder %s147, %s148
      %p162 = scmp.eq.s32.totalorder %s20, 1
      %p163 = por %p161, %p162
      %p165 = scmp.ne.s32.totalorder %s148, %s164
      %p166 = scmp.eq.s32.totalorder %s20, 0
      %p167 = por %p165, %p166
      %p168 = scmp.le.s32.totalorder 1, %s14
      %p169 = scmp.lt.s32.totalorder %s14, 3
      %p170 = pnand %p168, %p169
      %p171 = pneg %p170
      // Predicated region
      $region9: #{tpu_custom_call.1} parent=5 // pred_check
        _
      $region10: #{tpu_custom_call.1} parent=5 // pred_check_branch
        %173 = sbr.rel (%p170) target = $region12
      $region11: #{tpu_custom_call.1} parent=5 // pred_region
        %s174 = ssub.s32 %s14, 1
        // Predicated region
        $region13: #{tpu_custom_call.1} parent=11 // pred_check
          %p175 = pneg %p113
        $region14: #{tpu_custom_call.1} parent=11 // pred_check_branch
          %177 = sbr.rel (%p175) target = $region16
        $region15: #{tpu_custom_call.1} parent=11 // pred_region
          _
        $region16: #{tpu_custom_call.1} parent=11 // pred_fallthru
          _
        // Predicated region
        $region17: #{tpu_custom_call.1} parent=11 // pred_check
          %p178 = pneg %p134
        $region18: #{tpu_custom_call.1} parent=11 // pred_check_branch
          %180 = sbr.rel (%p178) target = $region20
        $region19: #{tpu_custom_call.1} parent=11 // pred_region
          _
        $region20: #{tpu_custom_call.1} parent=11 // pred_fallthru
          _
      $region12: #{tpu_custom_call.1} parent=5 // pred_fallthru
        _
      %p181 = scmp.lt.s32.totalorder %s14, 2
      // Predicated region
      $region21: #{tpu_custom_call.1} parent=5 // pred_check
        %p182 = pneg %p181
      $region22: #{tpu_custom_call.1} parent=5 // pred_check_branch
        %184 = sbr.rel (%p182) target = $region24
      $region23: #{tpu_custom_call.1} parent=5 // pred_region
        // Predicated region
        $region25: #{tpu_custom_call.1} parent=23 // pred_check
          %p185 = pneg %p34
        $region26: #{tpu_custom_call.1} parent=23 // pred_check_branch
          %187 = sbr.rel (%p185) target = $region28
        $region27: #{tpu_custom_call.1} parent=23 // pred_region
          %p188 = scmp.lt.s32.totalorder %s14, 1
          %s189 = scalar_select %p188, %s14, 1
          %s190 = smul.addr %s189, 2
          %s191 = smul.addr %s190, 4
          %s192 = scalar_lea.vmem %s0, %s191
        $region28: #{tpu_custom_call.1} parent=23 // pred_fallthru
          _
        // Predicated region
        $region29: #{tpu_custom_call.1} parent=23 // pred_check
          %p193 = pneg %p60
        $region30: #{tpu_custom_call.1} parent=23 // pred_check_branch
          %195 = sbr.rel (%p193) target = $region32
        $region31: #{tpu_custom_call.1} parent=23 // pred_region
          %p196 = scmp.lt.s32.totalorder %s14, 1
          %s197 = scalar_select %p196, %s14, 1
          %s198 = smul.addr %s197, 2
          %s199 = smul.addr %s198, 4
          %s200 = scalar_lea.vmem %s1, %s199
        $region32: #{tpu_custom_call.1} parent=23 // pred_fallthru
          _
        // Predicated region
        $region33: #{tpu_custom_call.1} parent=23 // pred_check
          %p201 = pneg %p86
        $region34: #{tpu_custom_call.1} parent=23 // pred_check_branch
          %203 = sbr.rel (%p201) target = $region36
        $region35: #{tpu_custom_call.1} parent=23 // pred_region
          %p204 = scmp.lt.s32.totalorder %s14, 1
          %s205 = scalar_select %p204, %s14, 1
          %s206 = smul.addr %s205, 2
          %s207 = smul.addr %s206, 4
          %s208 = scalar_lea.vmem %s2, %s207
        $region36: #{tpu_custom_call.1} parent=23 // pred_fallthru
          _
      $region24: #{tpu_custom_call.1} parent=5 // pred_fallthru
        _
      %p209 = scmp.le.s32.totalorder 1, %s14
      %p210 = scmp.lt.s32.totalorder %s14, 3
      %p211 = pnand %p209, %p210
      %p212 = pneg %p211
      // Predicated region
      $region37: #{tpu_custom_call.1} parent=5 // pred_check
        _
      $region38: #{tpu_custom_call.1} parent=5 // pred_check_branch
        %214 = sbr.rel (%p211) target = $region40
      $region39: #{tpu_custom_call.1} parent=5 // pred_region
        %s215 = ssub.s32 %s14, 1
        %p216 = scmp.lt.s32.totalorder %s19, 1
        %s217 = scalar_select %p216, %s19, 1
        %s218 = smul.addr %s217, 2
        %s219 = smul.addr %s218, 4
        %s220 = scalar_lea.vmem %s0, %s219
        %p221 = pneg %p40
        %p222 = pneg %p37
        %p223 = scmp.lt.s32.totalorder %s19, 1
        %s224 = scalar_select %p223, %s19, 1
        %s225 = smul.addr %s224, 2
        %s226 = smul.addr %s225, 4
        %s227 = scalar_lea.vmem %s1, %s226
        %p228 = pneg %p66
        %p229 = pneg %p63
        %p230 = scmp.lt.s32.totalorder %s19, 1
        %s231 = scalar_select %p230, %s19, 1
        %s232 = smul.addr %s231, 2
        %s233 = smul.addr %s232, 4
        %s234 = scalar_lea.vmem %s2, %s233
        %p235 = pneg %p92
        %p236 = pneg %p89
        %p237 = pneg %p113
        %p238 = pneg %p110
        %p239 = pneg %p134
        %p240 = pneg %p131
        %p241 = pneg %p160
        %p242 = pneg %p157
        %s243 = sand.u32 %s147, 1
        %s244 = scalar_lea.sflag [#allocation4], %s243
        %s245 = sand.u32 %s147, 1
        %s246 = smul.addr %s245, 16
        %s247 = scalar_lea.vmem [#allocation3], %s246
        %p248 = scmp.lt.s32.totalorder %s19, 1
        %s249 = scalar_select %p248, %s19, 1
        %s250 = smul.addr %s249, 2
        %s251 = smul.addr %s250, 4
        %s252 = scalar_lea.vmem %s0, %s251
        %p253 = scmp.lt.s32.totalorder %s19, 1
        %s254 = scalar_select %p253, %s19, 1
        %s255 = smul.addr %s254, 2
        %s256 = smul.addr %s255, 4
        %s257 = scalar_lea.vmem %s1, %s256
        %p258 = scmp.lt.s32.totalorder %s19, 1
        %s259 = scalar_select %p258, %s19, 1
        %s260 = smul.addr %s259, 2
        %s261 = smul.addr %s260, 4
        %s262 = scalar_lea.vmem %s2, %s261
        %s263 = smul.u32 2, %s19
        %v265 = vlaneseq
        %v266 = vshrl.u32 %v265, 7
        %v267 = vadd.s32 %v266, 8
        %v268 = vlaneseq
        %v269 = vand.u32 %v268, 127
        %vm270 = vcmp.eq.s32.totalorder %v266, %v269
        %vm271 = vcmp.eq.s32.totalorder %v267, %v269
        %v272 = vsel %vm270, 1.0, 0.0
        %v273 = vsel %vm271, 1.0, 0.0
        %v274 = vpack.c.bf16 %v273, %v272
        %v275 = vld [vmem:[%s252] sm:$0xf]
        %v276 = vld [vmem:[%s252 + $0x4] sm:$0xf]
        %v279 = vunpack.c.l.b16 %v275
        %v280 = vunpack.c.l.b16 %v276
        %v281 = vpack.c.b16 %v280, %v279
        %vm282 = vcmask 130048
        %v284 = vsel %vm282, %v274, 0
        %v287 = vsel %vm282, %v281, 0
        %289 = vmatpush.bf16.xpose.msra.mxu0 0
        %290 = vmatpush.bf16.xpose.msra.mxu0 0
        %291 = vmatpush.bf16.xpose.msra.mxu0 0
        %292 = vmatpush.bf16.xpose.msra.mxu0 0
        %293 = vmatpush.bf16.xpose.msra.mxu0 0
        %294 = vmatpush.bf16.xpose.msra.mxu0 0
        %295 = vmatpush.bf16.xpose.msra.mxu0 0
        %296 = vmatpush.bf16.xpose.msra.mxu0 %v287
        %297 = vmatmul.bf16.gmra.mxu0 %v284
        %v298 = vpop.f32.mrf.mxu0
        %v299 = vadd.f32 0.0, %v298
        %v300 = vpop.f32.mrf.mxu0
        %v301 = vadd.f32 0.0, %v300
        %302 = vdwg.mxu0
        %v303 = vpack.c.bf16 %v301, %v299
        %v304 = vld [vmem:[%s257] sm:$0xf]
        %v305 = vld [vmem:[%s257 + $0x4] sm:$0xf]
        %s306 = smul.u32 0, 2
        %s307 = smul.addr %s306, 4
        %s308 = scalar_lea.vmem [#allocation2], %s307
        %vm309 = vcmask 257024
        %310 = vst.msk [vmem:[%s308] sm:$0xf] %vm309, %v304
        %311 = vst.msk [vmem:[%s308 + $0x8] sm:$0xf] %vm309, %v305
        %v312 = vunpack.c.l.bf16 %v304
        %v313 = vunpack.c.l.bf16 %v305
        %v316 = vunpack.c.l.b16 %v304
        %v317 = vunpack.c.l.b16 %v305
        %v318 = vpack.c.b16 %v317, %v316
        %320 = vmatpush.bf16.msra.mxu0 0
        %321 = vmatpush.bf16.msra.mxu0 0
        %322 = vmatpush.bf16.msra.mxu0 0
        %323 = vmatpush.bf16.msra.mxu0 0
        %324 = vmatpush.bf16.msra.mxu0 0
        %325 = vmatpush.bf16.msra.mxu0 0
        %326 = vmatpush.bf16.msra.mxu0 0
        %327 = vmatpush.bf16.msra.mxu0 %v318
        %328 = vmatmul.bf16.gmra.mxu0 %v287
        %v329 = vpop.f32.mrf.mxu0
        %v330 = vadd.f32 0.0, %v329
        %v331 = vpop.f32.mrf.mxu0
        %v332 = vadd.f32 0.0, %v331
        %333 = vdwg.mxu0
        %v334 = vpack.c.bf16 %v330, %v330
        %v335 = vpack.c.bf16 %v332, %v332
        %338 = vrot.lane.b32.xlu0 %v334, 32
        %v339 = vpop.permute.xlu0 %338
        %340 = vrot.lane.b32.xlu0 %v335, 32
        %v341 = vpop.permute.xlu0 %340
        %vm344 = vcmask 519424
        %345 = vst.msk [vmem:[%s308] sm:$0xf] %vm344, %v339
        %346 = vst.msk [vmem:[%s308 + $0x8] sm:$0xf] %vm344, %v341
        %v347 = vunpack.c.l.b16 %v334
        %v348 = vunpack.c.l.b16 %v335
        %v349 = vpack.c.b16 %v348, %v347
        %351 = vmatpush.bf16.msra.mxu0 0
        %352 = vmatpush.bf16.msra.mxu0 0
        %353 = vmatpush.bf16.msra.mxu0 0
        %354 = vmatpush.bf16.msra.mxu0 0
        %355 = vmatpush.bf16.msra.mxu0 0
        %356 = vmatpush.bf16.msra.mxu0 0
        %357 = vmatpush.bf16.msra.mxu0 0
        %358 = vmatpush.bf16.msra.mxu0 %v349
        %359 = vmatmul.bf16.gmra.mxu0 %v287
        %v360 = vpop.f32.mrf.mxu0
        %v361 = vadd.f32 0.0, %v360
        %v362 = vpop.f32.mrf.mxu0
        %v363 = vadd.f32 0.0, %v362
        %364 = vdwg.mxu0
        %v365 = vmul.f32 %v361, 2.0
        %v366 = vmul.f32 %v363, 2.0
        %v367 = vsub.f32 %v365, %v312
        %v368 = vsub.f32 %v366, %v313
        %v369 = vpack.c.bf16 %v367, %v367
        %v370 = vpack.c.bf16 %v368, %v368
        %373 = vrot.lane.b32.xlu0 %v369, 64
        %v374 = vpop.permute.xlu0 %373
        %375 = vrot.lane.b32.xlu0 %v370, 64
        %v376 = vpop.permute.xlu0 %375
        %vm379 = vcmask 781824
        %380 = vst.msk [vmem:[%s308] sm:$0xf] %vm379, %v374
        %381 = vst.msk [vmem:[%s308 + $0x8] sm:$0xf] %vm379, %v376
        %v382 = vld [vmem:[%s262] sm:$0xf]
        %v383 = vld [vmem:[%s262 + $0x4] sm:$0xf]
        %386 = vrot.lane.b32.xlu0 %v382, 96
        %v387 = vpop.permute.xlu0 %386
        %388 = vrot.lane.b32.xlu0 %v383, 96
        %v389 = vpop.permute.xlu0 %388
        %vm392 = vcmask 1044224
        %393 = vst.msk [vmem:[%s308] sm:$0xf] %vm392, %v387
        %394 = vst.msk [vmem:[%s308 + $0x8] sm:$0xf] %vm392, %v389
        %v395 = vunpack.c.l.bf16 %v382
        %v396 = vunpack.c.l.bf16 %v383
        %v397 = vunpack.c.l.b16 %v382
        %v398 = vunpack.c.l.b16 %v383
        %v399 = vpack.c.b16 %v398, %v397
        %v402 = vsel %vm282, %v303, 0
        %404 = vmatpush.bf16.msra.mxu0 0
        %405 = vmatpush.bf16.msra.mxu0 0
        %406 = vmatpush.bf16.msra.mxu0 0
        %407 = vmatpush.bf16.msra.mxu0 0
        %408 = vmatpush.bf16.msra.mxu0 0
        %409 = vmatpush.bf16.msra.mxu0 0
        %410 = vmatpush.bf16.msra.mxu0 0
        %411 = vmatpush.bf16.msra.mxu0 %v399
        %412 = vmatmul.bf16.gmra.mxu0 %v402
        %v413 = vpop.f32.mrf.mxu0
        %v414 = vadd.f32 0.0, %v413
        %v415 = vpop.f32.mrf.mxu0
        %v416 = vadd.f32 0.0, %v415
        %417 = vdwg.mxu0
        %v418 = vpack.c.bf16 %v414, %v414
        %v419 = vpack.c.bf16 %v416, %v416
        %420 = vst.msk [vmem:[%s308 + $0x4] sm:$0xf] %vm309, %v418
        %421 = vst.msk [vmem:[%s308 + $0xc] sm:$0xf] %vm309, %v419
        %v424 = vunpack.c.l.b16 %v418
        %v425 = vunpack.c.l.b16 %v419
        %v426 = vpack.c.b16 %v425, %v424
        %428 = vmatpush.bf16.msra.mxu0 0
        %429 = vmatpush.bf16.msra.mxu0 0
        %430 = vmatpush.bf16.msra.mxu0 0
        %431 = vmatpush.bf16.msra.mxu0 0
        %432 = vmatpush.bf16.msra.mxu0 0
        %433 = vmatpush.bf16.msra.mxu0 0
        %434 = vmatpush.bf16.msra.mxu0 0
        %435 = vmatpush.bf16.msra.mxu0 %v426
        %436 = vmatmul.bf16.gmra.mxu0 %v402
        %v437 = vpop.f32.mrf.mxu0
        %v438 = vadd.f32 0.0, %v437
        %v439 = vpop.f32.mrf.mxu0
        %v440 = vadd.f32 0.0, %v439
        %441 = vdwg.mxu0
        %v442 = vmul.f32 %v438, 2.0
        %v443 = vmul.f32 %v440, 2.0
        %v444 = vsub.f32 %v442, %v395
        %v445 = vsub.f32 %v443, %v396
        %v446 = vpack.c.bf16 %v444, %v444
        %v447 = vpack.c.bf16 %v445, %v445
        %450 = vrot.lane.b32.xlu0 %v446, 32
        %v451 = vpop.permute.xlu0 %450
        %452 = vrot.lane.b32.xlu0 %v447, 32
        %v453 = vpop.permute.xlu0 %452
        %456 = vst.msk [vmem:[%s308 + $0x4] sm:$0xf] %vm344, %v451
        %457 = vst.msk [vmem:[%s308 + $0xc] sm:$0xf] %vm344, %v453
        %v458 = vld [vmem:[#allocation2] sm:$0xff]
        %v459 = vld [vmem:[#allocation2 + $0x8] sm:$0xff]
        %v460 = vld [vmem:[%s3] sm:$0xf]
        %v461 = vld [vmem:[%s3 + $0x4] sm:$0xf]
        %v462 = vld [vmem:[%s3 + $0x8] sm:$0xf]
        %v463 = vld [vmem:[%s3 + $0xc] sm:$0xf]
        %v464 = vld [vmem:[%s3 + $0x10] sm:$0xf]
        %v465 = vld [vmem:[%s3 + $0x14] sm:$0xf]
        %v466 = vld [vmem:[%s3 + $0x18] sm:$0xf]
        %v467 = vld [vmem:[%s3 + $0x1c] sm:$0xf]
        %v468 = vld [vmem:[%s3 + $0x20] sm:$0xf]
        %v469 = vld [vmem:[%s3 + $0x24] sm:$0xf]
        %v470 = vld [vmem:[%s3 + $0x28] sm:$0xf]
        %v471 = vld [vmem:[%s3 + $0x2c] sm:$0xf]
        %v472 = vld [vmem:[%s3 + $0x30] sm:$0xf]
        %v473 = vld [vmem:[%s3 + $0x34] sm:$0xf]
        %v474 = vld [vmem:[%s3 + $0x38] sm:$0xf]
        %v475 = vld [vmem:[%s3 + $0x3c] sm:$0xf]
        %v476 = vld [vmem:[%s3 + $0x40] sm:$0xf]
        %v477 = vld [vmem:[%s3 + $0x44] sm:$0xf]
        %v478 = vld [vmem:[%s3 + $0x48] sm:$0xf]
        %v479 = vld [vmem:[%s3 + $0x4c] sm:$0xf]
        %v480 = vld [vmem:[%s3 + $0x50] sm:$0xf]
        %v481 = vld [vmem:[%s3 + $0x54] sm:$0xf]
        %v482 = vld [vmem:[%s3 + $0x58] sm:$0xf]
        %v483 = vld [vmem:[%s3 + $0x5c] sm:$0xf]
        %v484 = vld [vmem:[%s4] sm:$0x1]
        %v486 = vperm.slane %v484, 0
        %v490 = vunpack.c.l.b16 %v458
        %v491 = vunpack.c.h.b16 %v458
        %v492 = vunpack.c.l.b16 %v459
        %v493 = vunpack.c.h.b16 %v459
        %v494 = vpack.c.b16 %v492, %v490
        %v495 = vpack.c.b16 %v493, %v491
        %v521 = vunpack.c.l.b16 %v460
        %v522 = vunpack.c.l.b16 %v461
        %v523 = vunpack.c.l.b16 %v462
        %v524 = vunpack.c.l.b16 %v463
        %v525 = vunpack.c.l.b16 %v464
        %v526 = vunpack.c.l.b16 %v465
        %v527 = vunpack.c.l.b16 %v466
        %v528 = vunpack.c.l.b16 %v467
        %v529 = vunpack.c.l.b16 %v468
        %v530 = vunpack.c.l.b16 %v469
        %v531 = vunpack.c.l.b16 %v470
        %v532 = vunpack.c.l.b16 %v471
        %v533 = vunpack.c.l.b16 %v472
        %v534 = vunpack.c.l.b16 %v473
        %v535 = vunpack.c.l.b16 %v474
        %v536 = vunpack.c.l.b16 %v475
        %v537 = vunpack.c.l.b16 %v476
        %v538 = vunpack.c.l.b16 %v477
        %v539 = vunpack.c.l.b16 %v478
        %v540 = vunpack.c.l.b16 %v479
        %v541 = vunpack.c.l.b16 %v480
        %v542 = vunpack.c.l.b16 %v481
        %v543 = vunpack.c.l.b16 %v482
        %v544 = vunpack.c.l.b16 %v483
        %v545 = vpack.c.b16 %v522, %v521
        %v546 = vpack.c.b16 %v524, %v523
        %v547 = vpack.c.b16 %v526, %v525
        %v548 = vpack.c.b16 %v528, %v527
        %v549 = vpack.c.b16 %v530, %v529
        %v550 = vpack.c.b16 %v532, %v531
        %v551 = vpack.c.b16 %v534, %v533
        %v552 = vpack.c.b16 %v536, %v535
        %v553 = vpack.c.b16 %v538, %v537
        %v554 = vpack.c.b16 %v540, %v539
        %v555 = vpack.c.b16 %v542, %v541
        %v556 = vpack.c.b16 %v544, %v543
        %vm569 = vcmask 523264
        %v571 = vsel %vm569, %v495, 0
        %573 = vmatpush.bf16.msra.mxu0 %v552
        %574 = vmatpush.bf16.msra.mxu0 %v551
        %575 = vmatpush.bf16.msra.mxu0 %v550
        %576 = vmatpush.bf16.msra.mxu0 %v549
        %577 = vmatpush.bf16.msra.mxu0 %v548
        %578 = vmatpush.bf16.msra.mxu0 %v547
        %579 = vmatpush.bf16.msra.mxu0 %v546
        %580 = vmatpush.bf16.msra.mxu0 %v545
        %581 = vmatmul.bf16.gmra.mxu0 %v494
        %v582 = vpop.f32.mrf.mxu0
        %v583 = vadd.f32 %v486, %v582
        %v584 = vpop.f32.mrf.mxu0
        %v585 = vadd.f32 %v486, %v584
        %586 = vdwg.mxu0
        %587 = vmatpush.bf16.msra.mxu0 0
        %588 = vmatpush.bf16.msra.mxu0 0
        %589 = vmatpush.bf16.msra.mxu0 0
        %590 = vmatpush.bf16.msra.mxu0 0
        %591 = vmatpush.bf16.msra.mxu0 %v556
        %592 = vmatpush.bf16.msra.mxu0 %v555
        %593 = vmatpush.bf16.msra.mxu0 %v554
        %594 = vmatpush.bf16.msra.mxu0 %v553
        %595 = vmatmul.bf16.gmra.mxu0 %v571
        %v596 = vpop.f32.mrf.mxu0
        %v597 = vadd.f32 %v583, %v596
        %v598 = vpop.f32.mrf.mxu0
        %v599 = vadd.f32 %v585, %v598
        %600 = vdwg.mxu0
        %vm601 = vcmask 261120
        %602 = vst.msk [vmem:[%s247] sm:$0xff] %vm601, %v597
        %603 = vst.msk [vmem:[%s247 + $0x8] sm:$0xff] %vm601, %v599
        %s604 = sand.u32 %s147, 1
        %s605 = scalar_lea.sflag [#allocation4], %s604
        %s606 = sand.u32 %s147, 1
        %s607 = smul.addr %s606, 16
        %s608 = scalar_lea.vmem [#allocation3], %s607
        // Predicated region
        $region41: #{tpu_custom_call.1} parent=39 // pred_check
          %p609 = pneg %p157
        $region42: #{tpu_custom_call.1} parent=39 // pred_check_branch
          %611 = sbr.rel (%p609) target = $region44
        $region43: #{tpu_custom_call.1} parent=39 // pred_region
          %s612 = smul.u32 2, %s19
          %614 = vsyncadd %s605, 0
          %s615 = smul.addr %s612, 8
          %s616 = scalar_lea.hbm %s5, %s615
          %s617 = sshll.u32 %s608, 4
          %s618 = int_to_ptr.vmem [resolvable:$true] %s617
          %s619 = sshll.u32 %s616, 4
          %s620 = int_to_ptr.hbm [resolvable:$true] %s619
          %625 = dma.vmem_to_hbm [thread:$0]  %s618, 256, %s620, %s605, 128, 128, 8
        $region44: #{tpu_custom_call.1} parent=39 // pred_fallthru
          _
      $region40: #{tpu_custom_call.1} parent=5 // pred_fallthru
        _
      %p626 = scmp.le.s32.totalorder 2, %s14
      // Predicated region
      $region45: #{tpu_custom_call.1} parent=5 // pred_check
        %p627 = pneg %p626
      $region46: #{tpu_custom_call.1} parent=5 // pred_check_branch
        %629 = sbr.rel (%p627) target = $region48
      $region47: #{tpu_custom_call.1} parent=5 // pred_region
        %s630 = ssub.s32 %s14, 2
        // Predicated region
        $region49: #{tpu_custom_call.1} parent=47 // pred_check
          %p631 = pneg %p163
        $region50: #{tpu_custom_call.1} parent=47 // pred_check_branch
          %633 = sbr.rel (%p631) target = $region52
        $region51: #{tpu_custom_call.1} parent=47 // pred_region
          %s634 = sand.u32 %s148, 1
          %s635 = scalar_lea.sflag [#allocation4], %s634
          %s636 = sand.u32 %s148, 1
          %s637 = smul.addr %s636, 16
          %s638 = scalar_lea.vmem [#allocation3], %s637
          %640 = dma.done %s635, 256
        $region52: #{tpu_custom_call.1} parent=47 // pred_fallthru
          _
      $region48: #{tpu_custom_call.1} parent=5 // pred_fallthru
        _
    $region6: #{tpu_custom_call.1} parent=1 // loop_footer
      %s18 = sadd.s32 1, %s14
    $region7: #{tpu_custom_call.1} parent=1 // loop_footer_branch
      %13 = sbr.rel target = $region3
    $region8: #{tpu_custom_call.1} parent=1 // loop_exit
      _
    %641 = vsyncpa [#allocation4], 1
    %s642 = scalar_lea.sflag [#allocation4], 1
    %643 = vsyncpa %s642, 1

</llo_original>
